<compile_context>
chip_gen: v5e
topology: v5e:2x2
jax: 0.10.0
libtpu: 0.0.40
codegen_flags: <defaults>
</compile_context>

<pallas_src>
import functools

import jax
import jax.numpy as jnp
from jax import lax
from jax.experimental import pallas as pl
from jax.experimental.pallas import tpu as pltpu

PACK = 128  # lane-dense packed output / slab width


def _round8(n):
    return -(-n // 8) * 8


def make_layout(cin, cbb, d, q, l, nc):
    """Row layout of the single packed parameter slab (all row starts % 8 == 0)."""
    entries = [
        ("q_pre",   (q, d)),          # (query_embed @ wq + bq) * scale
        ("bbwT",    (cbb, cin)),      # backbone 1x1 conv weight, transposed
        ("bbb",     (cbb, 1)),
        ("pwT",     (d, cbb)),        # input_proj weight, transposed
        ("pb",      (d, 1)),
        ("wkvT",    (2 * d, d)),      # [wk.T ; wv.T]
        ("kv_bias", (2 * d, l)),      # [wk.T@pos + bk ; broadcast(bv)]
        ("wo",      (d, d)),
        ("bo",      (1, d)),
        ("w1",      (d, d)),          # bbox MLP layer 0
        ("b1",      (1, d)),
        ("w2",      (d, d)),          # bbox MLP layer 1
        ("b2",      (1, d)),
        ("wc_pack", (d, PACK)),       # class head, packed into lanes [0:nc)
        ("w3_pack", (d, PACK)),       # bbox layer 2, packed into lanes [nc:nc+2)
        ("b_pack",  (1, PACK)),       # packed output bias
    ]
    layout = {}
    row = 0
    for name, shape in entries:
        layout[name] = (row, shape)
        row += _round8(shape[0])
    return layout, _round8(row)


# ----------------------------------------------------------------------------
# Fused forward kernel (no grid; everything resident in VMEM)
# ----------------------------------------------------------------------------
def _ecg_detr_kernel(x_ref, slab_ref, out_ref, *, layout, B, D, NC):
    f32 = jnp.float32

    def ld(name):
        r, (nr, ncols) = layout[name]
        return slab_ref[pl.ds(r, nr), pl.ds(0, ncols)]

    q_pre   = ld("q_pre")                       # (Q, D)
    bbwT    = ld("bbwT")                        # (Cbb, Cin)
    bbb     = ld("bbb")                         # (Cbb, 1)
    pwT     = ld("pwT")                         # (D, Cbb)
    pb      = ld("pb")                          # (D, 1)
    wkvT    = ld("wkvT")                        # (2D, D)
    kv_bias = ld("kv_bias")                     # (2D, L)

    # ---- encoder + single-head cross attention, batch unrolled (B=2) -------
    # Transposed layout: features live as (channels, L); L stays in lanes.
    attn_rows = []
    for b in range(B):
        xb = x_ref[b]                                                  # (Cin, L)
        featsT = jnp.maximum(
            jnp.dot(bbwT, xb, preferred_element_type=f32) + bbb, 0.0)  # (Cbb, L)
        projT = jnp.dot(pwT, featsT, preferred_element_type=f32) + pb  # (D, L)
        # fused K|V projection; pos & biases pre-folded into kv_bias
        kvT = jnp.dot(wkvT, projT, preferred_element_type=f32) + kv_bias   # (2D, L)
        kT = kvT[:D, :]                                                # (D, L)
        vT = kvT[D:, :]                                                # (D, L)
        s = jnp.dot(q_pre, kT, preferred_element_type=f32)             # (Q, L)
        m = jnp.max(s, axis=-1, keepdims=True)
        p = jnp.exp(s - m)
        denom = jnp.sum(p, axis=-1, keepdims=True)
        p = p * pl.reciprocal(denom, approx=True)
        # contract the lane (L) dims of p and vT -> (Q, D), no transpose needed
        attn_rows.append(
            lax.dot_general(p, vT, (((1,), (1,)), ((), ())),
                            preferred_element_type=f32))
    attn = jnp.concatenate(attn_rows, axis=0)                          # (B*Q, D)

    # ---- decoder output projection + heads ---------------------------------
    wo, bo = ld("wo"), ld("bo")
    w1, b1 = ld("w1"), ld("b1")
    w2, b2 = ld("w2"), ld("b2")
    wc_pack, w3_pack, b_pack = ld("wc_pack"), ld("w3_pack"), ld("b_pack")

    hs = jnp.dot(attn, wo, preferred_element_type=f32) + bo            # (B*Q, D)
    h1 = jnp.maximum(jnp.dot(hs, w1, preferred_element_type=f32) + b1, 0.0)
    h2 = jnp.maximum(jnp.dot(h1, w2, preferred_element_type=f32) + b2, 0.0)

    # class head + bbox layer 2, emitted directly as the lane-dense slab
    out = (jnp.dot(hs, wc_pack, preferred_element_type=f32)
           + jnp.dot(h2, w3_pack, preferred_element_type=f32)
           + b_pack)                                                    # (B*Q, 128)
    lane = lax.broadcasted_iota(jnp.int32, out.shape, 1)
    box_lane = (lane >= NC) & (lane < NC + 2)
    out_ref[...] = jnp.where(box_lane, jax.nn.sigmoid(out), out)


# ----------------------------------------------------------------------------
# Wrapper
# ----------------------------------------------------------------------------
def ecg_detr_forward(samples_ncl, slab, *, layout, Q, D, NC):
    """samples_ncl: (B, in_ch, L) -- raw PyTorch NCL layout, no wrapper transpose."""
    B, _, L = samples_ncl.shape
    assert L == layout["kv_bias"][1][1], "sequence length must match pos_embed (17)"

    kern = functools.partial(_ecg_detr_kernel, layout=layout, B=B, D=D, NC=NC)
    vmem = pl.BlockSpec(memory_space=pltpu.MemorySpace.VMEM)

    packed = pl.pallas_call(
        kern,
        out_shape=jax.ShapeDtypeStruct((B * Q, PACK), jnp.float32),
        in_specs=[vmem, vmem],
        out_specs=vmem,
    )(samples_ncl, slab)

    pred_logits = packed[:, :NC].reshape(B, Q, NC)
    pred_boxes = packed[:, NC:NC + 2].reshape(B, Q, 2)
    return {"pred_logits": pred_logits, "pred_boxes": pred_boxes}


# ----------------------------------------------------------------------------
# Deterministic init: build raw params, hoist parameter-only compute, pack slab
# ----------------------------------------------------------------------------
def init_slab(key, *, in_ch, c_bb, d, num_classes, num_queries, seq_len):
    nc = num_classes + 1
    ks = jax.random.split(key, 24)

    def w(k, shape, fan_in):
        return jax.random.normal(k, shape, jnp.float32) / jnp.sqrt(jnp.float32(fan_in))

    def bias(k, n):
        return 0.02 * jax.random.normal(k, (n,), jnp.float32)

    bbw = w(ks[0], (in_ch, c_bb), in_ch);  bbb = bias(ks[12], c_bb)
    pw  = w(ks[1], (c_bb, d), c_bb);       pb  = bias(ks[13], d)
    query = w(ks[2], (num_queries, d), 1.0)
    pos   = w(ks[3], (d, seq_len), 1.0)                # nn.Embedding(hidden_dim, 17).weight
    wq = w(ks[4], (d, d), d); bq = bias(ks[14], d)
    wk = w(ks[5], (d, d), d); bk = bias(ks[15], d)
    wv = w(ks[6], (d, d), d); bv = bias(ks[16], d)
    wo = w(ks[7], (d, d), d); bo = bias(ks[17], d)
    cw = w(ks[8], (d, nc), d); cb = bias(ks[18], nc)
    w1 = w(ks[9], (d, d), d);  b1 = bias(ks[19], d)
    w2 = w(ks[10], (d, d), d); b2 = bias(ks[20], d)
    w3 = w(ks[11], (d, 2), d); b3 = bias(ks[21], 2)

    # ---- hoisted parameter-only compute ------------------------------------
    scale = 1.0 / (d ** 0.5)
    q_pre = (query @ wq + bq[None, :]) * scale                         # (Q, D)
    pos_kT = wk.T @ pos + bk[:, None]                                  # (D, L)
    kv_bias = jnp.concatenate(
        [pos_kT, jnp.broadcast_to(bv[:, None], (d, seq_len))], axis=0)  # (2D, L)
    wkvT = jnp.concatenate([wk.T, wv.T], axis=0)                       # (2D, D)
    bbwT = bbw.T                                                       # (Cbb, Cin)
    pwT = pw.T                                                         # (D, Cbb)
    wc_pack = jnp.zeros((d, PACK), jnp.float32).at[:, :nc].set(cw)
    w3_pack = jnp.zeros((d, PACK), jnp.float32).at[:, nc:nc + 2].set(w3)
    b_pack = (jnp.zeros((1, PACK), jnp.float32)
              .at[0, :nc].set(cb).at[0, nc:nc + 2].set(b3))

    # ---- pack everything into one lane-dense slab ---------------------------
    layout, slab_rows = make_layout(in_ch, c_bb, d, num_queries, seq_len, nc)
    slab = jnp.zeros((slab_rows, PACK), jnp.float32)

    def put(s, name, val):
        r, shp = layout[name]
        assert tuple(val.shape) == shp, (name, val.shape, shp)
        return s.at[r:r + shp[0], :shp[1]].set(val)

    slab = put(slab, "q_pre", q_pre)
    slab = put(slab, "bbwT", bbwT)
    slab = put(slab, "bbb", bbb[:, None])
    slab = put(slab, "pwT", pwT)
    slab = put(slab, "pb", pb[:, None])
    slab = put(slab, "wkvT", wkvT)
    slab = put(slab, "kv_bias", kv_bias)
    slab = put(slab, "wo", wo)
    slab = put(slab, "bo", bo[None, :])
    slab = put(slab, "w1", w1)
    slab = put(slab, "b1", b1[None, :])
    slab = put(slab, "w2", w2)
    slab = put(slab, "b2", b2[None, :])
    slab = put(slab, "wc_pack", wc_pack)
    slab = put(slab, "w3_pack", w3_pack)
    slab = put(slab, "b_pack", b_pack)
    return slab, layout


# ----------------------------------------------------------------------------
if __name__ == "__main__":
    B, IN_CH, SEQ = 2, 4, 17          # pos_embed in the module hard-codes L = 17
    C_BB = 8                          # backbone.num_channels (synthetic)
    HIDDEN = 32                       # transformer.d_model   (synthetic)
    NUM_CLASSES = 4
    NUM_QUERIES = 8
    NC = NUM_CLASSES + 1

    key = jax.random.PRNGKey(0)
    k_in, k_par = jax.random.split(key)
    samples = jax.random.normal(k_in, (B, IN_CH, SEQ), jnp.float32)   # NCL, like PyTorch

    slab, layout = init_slab(
        k_par, in_ch=IN_CH, c_bb=C_BB, d=HIDDEN,
        num_classes=NUM_CLASSES, num_queries=NUM_QUERIES, seq_len=SEQ)

    fwd = jax.jit(functools.partial(
        ecg_detr_forward, layout=layout, Q=NUM_QUERIES, D=HIDDEN, NC=NC))

    out = fwd(samples, slab)
    jax.block_until_ready(out)

    assert out["pred_logits"].shape == (B, NUM_QUERIES, NC)
    assert out["pred_boxes"].shape == (B, NUM_QUERIES, 2)
    assert bool(jnp.all(out["pred_boxes"] >= 0.0)) and bool(jnp.all(out["pred_boxes"] <= 1.0))
    assert bool(jnp.all(jnp.isfinite(out["pred_logits"])))
    assert bool(jnp.all(jnp.isfinite(out["pred_boxes"])))
    print("KERNEL_OK")
</pallas_src>

<mosaic_0001>
module attributes {stable_mosaic.version = 11 : i64} {
  func.func @_ecg_detr_kernel(%arg0: memref<2x4x17xf32, #tpu.memory_space<vmem>>, %arg1: memref<408x128xf32, #tpu.memory_space<vmem>>, %arg2: memref<16x128xf32, #tpu.memory_space<vmem>>) attributes {dimension_semantics = [], scalar_prefetch = 0 : i64, scratch_operands = 0 : i64, tpu.core_type = #tpu.core_type<tc>} {
    %c0 = arith.constant 0 : index
    %c0_0 = arith.constant 0 : index
    %0 = vector.load %arg1[%c0, %c0_0] : memref<408x128xf32, #tpu.memory_space<vmem>>, vector<8x32xf32>
    %c8 = arith.constant 8 : index
    %c0_1 = arith.constant 0 : index
    %1 = vector.load %arg1[%c8, %c0_1] : memref<408x128xf32, #tpu.memory_space<vmem>>, vector<8x4xf32>
    %c16 = arith.constant 16 : index
    %c0_2 = arith.constant 0 : index
    %2 = vector.load %arg1[%c16, %c0_2] : memref<408x128xf32, #tpu.memory_space<vmem>>, vector<8x1xf32>
    %c24 = arith.constant 24 : index
    %c0_3 = arith.constant 0 : index
    %3 = vector.load %arg1[%c24, %c0_3] : memref<408x128xf32, #tpu.memory_space<vmem>>, vector<32x8xf32>
    %c56 = arith.constant 56 : index
    %c0_4 = arith.constant 0 : index
    %4 = vector.load %arg1[%c56, %c0_4] : memref<408x128xf32, #tpu.memory_space<vmem>>, vector<32x1xf32>
    %c88 = arith.constant 88 : index
    %c0_5 = arith.constant 0 : index
    %5 = vector.load %arg1[%c88, %c0_5] : memref<408x128xf32, #tpu.memory_space<vmem>>, vector<64x32xf32>
    %c152 = arith.constant 152 : index
    %c0_6 = arith.constant 0 : index
    %6 = vector.load %arg1[%c152, %c0_6] : memref<408x128xf32, #tpu.memory_space<vmem>>, vector<64x17xf32>
    %c0_7 = arith.constant 0 : index
    %c0_8 = arith.constant 0 : index
    %c0_9 = arith.constant 0 : index
    %7 = vector.load %arg0[%c0_7, %c0_8, %c0_9] : memref<2x4x17xf32, #tpu.memory_space<vmem>>, vector<1x4x17xf32>
    %8 = vector.shape_cast %7 : vector<1x4x17xf32> to vector<4x17xf32>
    %cst = arith.constant dense<0.000000e+00> : vector<8x17xf32>
    %9 = tpu.matmul %1, %8, %cst {dimension_numbers = #tpu.dot_dimension_numbers<[1], [0], [0], [1], [0, 0, 1, 1], [], []>} : vector<8x4xf32>, vector<4x17xf32>, vector<8x17xf32> -> vector<8x17xf32>
    %10 = vector.broadcast %2 : vector<8x1xf32> to vector<8x17xf32>
    %11 = arith.addf %9, %10 : vector<8x17xf32>
    %cst_10 = arith.constant 0.000000e+00 : f32
    %12 = vector.broadcast %cst_10 : f32 to vector<8x17xf32>
    %13 = arith.maximumf %11, %12 : vector<8x17xf32>
    %cst_11 = arith.constant dense<0.000000e+00> : vector<32x17xf32>
    %14 = tpu.matmul %3, %13, %cst_11 {dimension_numbers = #tpu.dot_dimension_numbers<[1], [0], [0], [1], [0, 0, 1, 1], [], []>} : vector<32x8xf32>, vector<8x17xf32>, vector<32x17xf32> -> vector<32x17xf32>
    %15 = vector.broadcast %4 : vector<32x1xf32> to vector<32x17xf32>
    %16 = arith.addf %14, %15 : vector<32x17xf32>
    %cst_12 = arith.constant dense<0.000000e+00> : vector<64x17xf32>
    %17 = tpu.matmul %5, %16, %cst_12 {dimension_numbers = #tpu.dot_dimension_numbers<[1], [0], [0], [1], [0, 0, 1, 1], [], []>} : vector<64x32xf32>, vector<32x17xf32>, vector<64x17xf32> -> vector<64x17xf32>
    %18 = arith.addf %17, %6 : vector<64x17xf32>
    %19 = vector.extract_strided_slice %18 {offsets = [0, 0], sizes = [32, 17], strides = [1, 1]} : vector<64x17xf32> to vector<32x17xf32>
    %20 = vector.extract_strided_slice %18 {offsets = [32, 0], sizes = [32, 17], strides = [1, 1]} : vector<64x17xf32> to vector<32x17xf32>
    %cst_13 = arith.constant dense<0.000000e+00> : vector<8x17xf32>
    %21 = tpu.matmul %0, %19, %cst_13 {dimension_numbers = #tpu.dot_dimension_numbers<[1], [0], [0], [1], [0, 0, 1, 1], [], []>} : vector<8x32xf32>, vector<32x17xf32>, vector<8x17xf32> -> vector<8x17xf32>
    %cst_14 = arith.constant dense<0xFF800000> : vector<8xf32>
    %22 = vector.multi_reduction <maximumf>, %21, %cst_14 [1] : vector<8x17xf32> to vector<8xf32>
    %23 = vector.shape_cast %22 : vector<8xf32> to vector<8x1xf32>
    %24 = vector.broadcast %23 : vector<8x1xf32> to vector<8x17xf32>
    %25 = arith.subf %21, %24 : vector<8x17xf32>
    %26 = math.exp %25 : vector<8x17xf32>
    %cst_15 = arith.constant dense<0.000000e+00> : vector<8xf32>
    %27 = vector.multi_reduction <add>, %26, %cst_15 [1] : vector<8x17xf32> to vector<8xf32>
    %28 = vector.shape_cast %27 : vector<8xf32> to vector<8x1xf32>
    %29 = tpu.reciprocal %28 {approx = true} : vector<8x1xf32> -> vector<8x1xf32>
    %30 = vector.broadcast %29 : vector<8x1xf32> to vector<8x17xf32>
    %31 = arith.mulf %26, %30 : vector<8x17xf32>
    %cst_16 = arith.constant dense<0.000000e+00> : vector<8x32xf32>
    %32 = tpu.matmul %31, %20, %cst_16 {dimension_numbers = #tpu.dot_dimension_numbers<[1], [1], [0], [0], [0, 0, 1, 0], [], []>} : vector<8x17xf32>, vector<32x17xf32>, vector<8x32xf32> -> vector<8x32xf32>
    %c1 = arith.constant 1 : index
    %c0_17 = arith.constant 0 : index
    %c0_18 = arith.constant 0 : index
    %33 = vector.load %arg0[%c1, %c0_17, %c0_18] : memref<2x4x17xf32, #tpu.memory_space<vmem>>, vector<1x4x17xf32>
    %34 = vector.shape_cast %33 : vector<1x4x17xf32> to vector<4x17xf32>
    %cst_19 = arith.constant dense<0.000000e+00> : vector<8x17xf32>
    %35 = tpu.matmul %1, %34, %cst_19 {dimension_numbers = #tpu.dot_dimension_numbers<[1], [0], [0], [1], [0, 0, 1, 1], [], []>} : vector<8x4xf32>, vector<4x17xf32>, vector<8x17xf32> -> vector<8x17xf32>
    %36 = vector.broadcast %2 : vector<8x1xf32> to vector<8x17xf32>
    %37 = arith.addf %35, %36 : vector<8x17xf32>
    %cst_20 = arith.constant 0.000000e+00 : f32
    %38 = vector.broadcast %cst_20 : f32 to vector<8x17xf32>
    %39 = arith.maximumf %37, %38 : vector<8x17xf32>
    %cst_21 = arith.constant dense<0.000000e+00> : vector<32x17xf32>
    %40 = tpu.matmul %3, %39, %cst_21 {dimension_numbers = #tpu.dot_dimension_numbers<[1], [0], [0], [1], [0, 0, 1, 1], [], []>} : vector<32x8xf32>, vector<8x17xf32>, vector<32x17xf32> -> vector<32x17xf32>
    %41 = vector.broadcast %4 : vector<32x1xf32> to vector<32x17xf32>
    %42 = arith.addf %40, %41 : vector<32x17xf32>
    %cst_22 = arith.constant dense<0.000000e+00> : vector<64x17xf32>
    %43 = tpu.matmul %5, %42, %cst_22 {dimension_numbers = #tpu.dot_dimension_numbers<[1], [0], [0], [1], [0, 0, 1, 1], [], []>} : vector<64x32xf32>, vector<32x17xf32>, vector<64x17xf32> -> vector<64x17xf32>
    %44 = arith.addf %43, %6 : vector<64x17xf32>
    %45 = vector.extract_strided_slice %44 {offsets = [0, 0], sizes = [32, 17], strides = [1, 1]} : vector<64x17xf32> to vector<32x17xf32>
    %46 = vector.extract_strided_slice %44 {offsets = [32, 0], sizes = [32, 17], strides = [1, 1]} : vector<64x17xf32> to vector<32x17xf32>
    %cst_23 = arith.constant dense<0.000000e+00> : vector<8x17xf32>
    %47 = tpu.matmul %0, %45, %cst_23 {dimension_numbers = #tpu.dot_dimension_numbers<[1], [0], [0], [1], [0, 0, 1, 1], [], []>} : vector<8x32xf32>, vector<32x17xf32>, vector<8x17xf32> -> vector<8x17xf32>
    %cst_24 = arith.constant dense<0xFF800000> : vector<8xf32>
    %48 = vector.multi_reduction <maximumf>, %47, %cst_24 [1] : vector<8x17xf32> to vector<8xf32>
    %49 = vector.shape_cast %48 : vector<8xf32> to vector<8x1xf32>
    %50 = vector.broadcast %49 : vector<8x1xf32> to vector<8x17xf32>
    %51 = arith.subf %47, %50 : vector<8x17xf32>
    %52 = math.exp %51 : vector<8x17xf32>
    %cst_25 = arith.constant dense<0.000000e+00> : vector<8xf32>
    %53 = vector.multi_reduction <add>, %52, %cst_25 [1] : vector<8x17xf32> to vector<8xf32>
    %54 = vector.shape_cast %53 : vector<8xf32> to vector<8x1xf32>
    %55 = tpu.reciprocal %54 {approx = true} : vector<8x1xf32> -> vector<8x1xf32>
    %56 = vector.broadcast %55 : vector<8x1xf32> to vector<8x17xf32>
    %57 = arith.mulf %52, %56 : vector<8x17xf32>
    %cst_26 = arith.constant dense<0.000000e+00> : vector<8x32xf32>
    %58 = tpu.matmul %57, %46, %cst_26 {dimension_numbers = #tpu.dot_dimension_numbers<[1], [1], [0], [0], [0, 0, 1, 0], [], []>} : vector<8x17xf32>, vector<32x17xf32>, vector<8x32xf32> -> vector<8x32xf32>
    %59 = tpu.concatenate %32, %58 in 0 : vector<8x32xf32>, vector<8x32xf32> -> vector<16x32xf32>
    %c216 = arith.constant 216 : index
    %c0_27 = arith.constant 0 : index
    %60 = vector.load %arg1[%c216, %c0_27] : memref<408x128xf32, #tpu.memory_space<vmem>>, vector<32x32xf32>
    %c248 = arith.constant 248 : index
    %c0_28 = arith.constant 0 : index
    %61 = vector.load %arg1[%c248, %c0_28] : memref<408x128xf32, #tpu.memory_space<vmem>>, vector<1x32xf32>
    %c256 = arith.constant 256 : index
    %c0_29 = arith.constant 0 : index
    %62 = vector.load %arg1[%c256, %c0_29] : memref<408x128xf32, #tpu.memory_space<vmem>>, vector<32x32xf32>
    %c288 = arith.constant 288 : index
    %c0_30 = arith.constant 0 : index
    %63 = vector.load %arg1[%c288, %c0_30] : memref<408x128xf32, #tpu.memory_space<vmem>>, vector<1x32xf32>
    %c296 = arith.constant 296 : index
    %c0_31 = arith.constant 0 : index
    %64 = vector.load %arg1[%c296, %c0_31] : memref<408x128xf32, #tpu.memory_space<vmem>>, vector<32x32xf32>
    %c328 = arith.constant 328 : index
    %c0_32 = arith.constant 0 : index
    %65 = vector.load %arg1[%c328, %c0_32] : memref<408x128xf32, #tpu.memory_space<vmem>>, vector<1x32xf32>
    %c336 = arith.constant 336 : index
    %c0_33 = arith.constant 0 : index
    %66 = vector.load %arg1[%c336, %c0_33] : memref<408x128xf32, #tpu.memory_space<vmem>>, vector<32x128xf32>
    %c368 = arith.constant 368 : index
    %c0_34 = arith.constant 0 : index
    %67 = vector.load %arg1[%c368, %c0_34] : memref<408x128xf32, #tpu.memory_space<vmem>>, vector<32x128xf32>
    %c400 = arith.constant 400 : index
    %c0_35 = arith.constant 0 : index
    %68 = vector.load %arg1[%c400, %c0_35] : memref<408x128xf32, #tpu.memory_space<vmem>>, vector<1x128xf32>
    %cst_36 = arith.constant dense<0.000000e+00> : vector<16x32xf32>
    %69 = tpu.matmul %59, %60, %cst_36 {dimension_numbers = #tpu.dot_dimension_numbers<[1], [0], [0], [1], [0, 0, 1, 1], [], []>} : vector<16x32xf32>, vector<32x32xf32>, vector<16x32xf32> -> vector<16x32xf32>
    %70 = vector.broadcast %61 : vector<1x32xf32> to vector<16x32xf32>
    %71 = arith.addf %69, %70 : vector<16x32xf32>
    %cst_37 = arith.constant dense<0.000000e+00> : vector<16x32xf32>
    %72 = tpu.matmul %71, %62, %cst_37 {dimension_numbers = #tpu.dot_dimension_numbers<[1], [0], [0], [1], [0, 0, 1, 1], [], []>} : vector<16x32xf32>, vector<32x32xf32>, vector<16x32xf32> -> vector<16x32xf32>
    %73 = vector.broadcast %63 : vector<1x32xf32> to vector<16x32xf32>
    %74 = arith.addf %72, %73 : vector<16x32xf32>
    %cst_38 = arith.constant 0.000000e+00 : f32
    %75 = vector.broadcast %cst_38 : f32 to vector<16x32xf32>
    %76 = arith.maximumf %74, %75 : vector<16x32xf32>
    %cst_39 = arith.constant dense<0.000000e+00> : vector<16x32xf32>
    %77 = tpu.matmul %76, %64, %cst_39 {dimension_numbers = #tpu.dot_dimension_numbers<[1], [0], [0], [1], [0, 0, 1, 1], [], []>} : vector<16x32xf32>, vector<32x32xf32>, vector<16x32xf32> -> vector<16x32xf32>
    %78 = vector.broadcast %65 : vector<1x32xf32> to vector<16x32xf32>
    %79 = arith.addf %77, %78 : vector<16x32xf32>
    %cst_40 = arith.constant 0.000000e+00 : f32
    %80 = vector.broadcast %cst_40 : f32 to vector<16x32xf32>
    %81 = arith.maximumf %79, %80 : vector<16x32xf32>
    %cst_41 = arith.constant dense<0.000000e+00> : vector<16x128xf32>
    %82 = tpu.matmul %71, %66, %cst_41 {dimension_numbers = #tpu.dot_dimension_numbers<[1], [0], [0], [1], [0, 0, 1, 1], [], []>} : vector<16x32xf32>, vector<32x128xf32>, vector<16x128xf32> -> vector<16x128xf32>
    %cst_42 = arith.constant dense<0.000000e+00> : vector<16x128xf32>
    %83 = tpu.matmul %81, %67, %cst_42 {dimension_numbers = #tpu.dot_dimension_numbers<[1], [0], [0], [1], [0, 0, 1, 1], [], []>} : vector<16x32xf32>, vector<32x128xf32>, vector<16x128xf32> -> vector<16x128xf32>
    %84 = arith.addf %82, %83 : vector<16x128xf32>
    %85 = vector.broadcast %68 : vector<1x128xf32> to vector<16x128xf32>
    %86 = arith.addf %84, %85 : vector<16x128xf32>
    %87 = tpu.iota {dimensions = array<i32: 1>} : vector<16x128xi32>
    %c5_i32 = arith.constant 5 : i32
    %88 = vector.broadcast %c5_i32 : i32 to vector<16x128xi32>
    %89 = arith.cmpi sge, %87, %88 : vector<16x128xi32>
    %c7_i32 = arith.constant 7 : i32
    %90 = vector.broadcast %c7_i32 : i32 to vector<16x128xi32>
    %91 = arith.cmpi slt, %87, %90 : vector<16x128xi32>
    %92 = arith.andi %89, %91 : vector<16x128xi1>
    %93 = arith.negf %86 : vector<16x128xf32>
    %94 = math.exp %93 : vector<16x128xf32>
    %cst_43 = arith.constant 1.000000e+00 : f32
    %95 = vector.broadcast %cst_43 : f32 to vector<16x128xf32>
    %96 = arith.addf %95, %94 : vector<16x128xf32>
    %97 = arith.divf %95, %96 : vector<16x128xf32>
    %98 = arith.select %92, %97, %86 : vector<16x128xi1>, vector<16x128xf32>
    %c0_44 = arith.constant 0 : index
    %c0_45 = arith.constant 0 : index
    %99 = vector.load %arg2[%c0_44, %c0_45] : memref<16x128xf32, #tpu.memory_space<vmem>>, vector<16x128xf32>
    tpu.vector_store %arg2[%c0_44, %c0_45], %98 {strides = array<i32>} : memref<16x128xf32, #tpu.memory_space<vmem>>, vector<16x128xf32>,
    return
  }
}

</mosaic_0001>

<llo_original>
// kernel: ecg_detr_forward.1
$region0: #{ecg_detr_forward.1}
  #allocation0 [shape = 'u32[]', space=smem, size = 0x4, offset = 0x4, fixed_abs, tag = 'smem constant byte address 0x4 - core index']
  #allocation1 [shape = 'u32[72,128]{1,0:T(1,128)}', space=vmem, size = 0x9000, scoped, tag = 'internal scratch']
  %s0 = inlined_call_operand.hbm [shape: f32[2,4,17], index: 0, kind: input, shape index: {}]
  %s1 = inlined_call_operand.hbm [shape: f32[408,128], index: 1, kind: input, shape index: {}]
  %s2 = inlined_call_operand.vmem [shape: f32[16,128], index: 2, kind: output, shape index: {}]
  %s3 = sld [smem:[#allocation0]]
  $region26: #{ecg_detr_forward.1} parent=0
    _
  %s5 = ssub.s32 1, %s3
  %s6 = scalar_select 0, %s5, %s3
  $region1: #{ecg_detr_forward.1} parent=0
    #allocation2 [shape = 'u8[4096]{0}', space=vmem, size = 0x1000, scoped, tag = 'input window, operand 0, single buffered']
    #allocation3 [shape = 's32[1]{0}', space=sflag, size = 0x4, scoped, tag = 'scoped memory for ecg_detr_forward.1']
    #allocation4 [shape = 'u8[208896]{0}', space=vmem, size = 0x33000, scoped, tag = 'input window, operand 1, single buffered']
    #allocation5 [shape = 's32[1]{0}', space=sflag, size = 0x4, scoped, tag = 'scoped memory for ecg_detr_forward.1']
    %7 = vsyncpa [#allocation3], 0
    %8 = vsyncpa [#allocation5], 0
    // Predicated region
    $region2: #{ecg_detr_forward.1} parent=1 // pred_check
      _
    $region3: #{ecg_detr_forward.1} parent=1 // pred_check_branch
      %10 = sbr.rel (0) target = $region5
    $region4: #{ecg_detr_forward.1} parent=1 // pred_region
      %12 = vsyncadd [#allocation3], 0
      %s13 = sshll.u32 %s0, 4
      %s14 = int_to_ptr.hbm [resolvable:$true] %s13
      %s15 = sshll.u32 [#allocation2], 4
      %s16 = int_to_ptr.vmem [resolvable:$true] %s15
      %21 = dma.hbm_to_vmem [thread:$0]  %s14, 128, %s16, [#allocation3], 64, 64, 4
    $region5: #{ecg_detr_forward.1} parent=1 // pred_fallthru
      _
    // Predicated region
    $region6: #{ecg_detr_forward.1} parent=1 // pred_check
      _
    $region7: #{ecg_detr_forward.1} parent=1 // pred_check_branch
      %23 = sbr.rel (0) target = $region9
    $region8: #{ecg_detr_forward.1} parent=1 // pred_region
      %25 = vsyncadd [#allocation5], 0
      %s26 = sshll.u32 %s1, 4
      %s27 = int_to_ptr.hbm [resolvable:$true] %s26
      %s28 = sshll.u32 [#allocation4], 4
      %s29 = int_to_ptr.vmem [resolvable:$true] %s28
      %34 = dma.hbm_to_vmem [thread:$0]  %s27, 6528, %s29, [#allocation5], 128, 128, 8
    $region9: #{ecg_detr_forward.1} parent=1 // pred_fallthru
      _
    // Predicated region
    $region10: #{ecg_detr_forward.1} parent=1 // pred_check
      _
    $region11: #{ecg_detr_forward.1} parent=1 // pred_check_branch
      %36 = sbr.rel (0) target = $region13
    $region12: #{ecg_detr_forward.1} parent=1 // pred_region
      %38 = dma.done [#allocation3], 128
    $region13: #{ecg_detr_forward.1} parent=1 // pred_fallthru
      _
    // Predicated region
    $region14: #{ecg_detr_forward.1} parent=1 // pred_check
      _
    $region15: #{ecg_detr_forward.1} parent=1 // pred_check_branch
      %40 = sbr.rel (0) target = $region17
    $region16: #{ecg_detr_forward.1} parent=1 // pred_region
      %42 = dma.done [#allocation5], 6528
    $region17: #{ecg_detr_forward.1} parent=1 // pred_fallthru
      _
    %v43 = vld [vmem:[#allocation4] sm:$0xff]
    %v44 = vld [vmem:[#allocation4 + $0x8] sm:$0xff]
    %v45 = vld [vmem:[#allocation4 + $0x10] sm:$0xff]
    %v46 = vld [vmem:[#allocation4 + $0x18] sm:$0xff]
    %v47 = vld [vmem:[#allocation4 + $0x20] sm:$0xff]
    %v48 = vld [vmem:[#allocation4 + $0x28] sm:$0xff]
    %v49 = vld [vmem:[#allocation4 + $0x30] sm:$0xff]
    %v50 = vld [vmem:[#allocation4 + $0x38] sm:$0xff]
    %v51 = vld [vmem:[#allocation4 + $0x40] sm:$0xff]
    %v52 = vld [vmem:[#allocation4 + $0x48] sm:$0xff]
    %v53 = vld [vmem:[#allocation4 + $0x50] sm:$0xff]
    %v54 = vld [vmem:[#allocation4 + $0x58] sm:$0xff]
    %v55 = vld [vmem:[#allocation4 + $0x60] sm:$0xff]
    %v56 = vld [vmem:[#allocation4 + $0x68] sm:$0xff]
    %v57 = vld [vmem:[#allocation4 + $0x70] sm:$0xff]
    %v58 = vld [vmem:[#allocation4 + $0x78] sm:$0xff]
    %v59 = vld [vmem:[#allocation4 + $0x80] sm:$0xff]
    %v60 = vld [vmem:[#allocation4 + $0x88] sm:$0xff]
    %v61 = vld [vmem:[#allocation4 + $0x90] sm:$0xff]
    %v62 = vld [vmem:[#allocation4 + $0x98] sm:$0xff]
    %v63 = vld [vmem:[#allocation4 + $0xa0] sm:$0xff]
    %v64 = vld [vmem:[#allocation4 + $0xa8] sm:$0xff]
    %v65 = vld [vmem:[#allocation4 + $0xb0] sm:$0xff]
    %v66 = vld [vmem:[#allocation4 + $0xb8] sm:$0xff]
    %v67 = vld [vmem:[#allocation4 + $0xc0] sm:$0xff]
    %v68 = vld [vmem:[#allocation4 + $0xc8] sm:$0xff]
    %v69 = vld [vmem:[#allocation4 + $0xd0] sm:$0xff]
    %v70 = vld [vmem:[#allocation2] sm:$0xf]
    %72 = vset.pattern.permute.xlu0 0
    %73 = vperm.xlu0 %72, %v45
    %v74 = vpop.permute.xlu0 %73
    %vm76 = vcmask 31744
    %v78 = vsel %vm76, %v44, 0
    %vm80 = vcmask 1043456
    %v82 = vsel %vm80, %v70, 0
    %84 = vmatpush.msra.mxu0 0.0
    %85 = vmatpush.msra.mxu0 0.0
    %86 = vmatpush.msra.mxu0 0.0
    %87 = vmatpush.msra.mxu0 0.0
    %88 = vmatpush.msra.mxu0 0.0
    %89 = vmatpush.msra.mxu0 0.0
    %90 = vmatpush.msra.mxu0 0.0
    %91 = vmatpush.msra.mxu0 0.0
    %92 = vmatpush.msra.mxu0 0.0
    %93 = vmatpush.msra.mxu0 0.0
    %94 = vmatpush.msra.mxu0 0.0
    %95 = vmatpush.msra.mxu0 0.0
    %96 = vmatpush.msra.mxu0 0.0
    %97 = vmatpush.msra.mxu0 0.0
    %98 = vmatpush.msra.mxu0 0.0
    %99 = vmatpush.msra.mxu0 %v82
    %100 = vmatmul.f32.gmra.mxu0 %v78
    %v101 = vpop.f32.mrf.mxu0
    %v102 = vadd.f32 %v74, %v101
    %103 = vdwg.mxu0
    %v104 = vmax.f32 %v102, 0.0
    %106 = vset.pattern.permute.xlu0 0
    %107 = vperm.xlu0 %106, %v50
    %v108 = vpop.permute.xlu0 %107
    %111 = vset.pattern.permute.xlu0 0
    %112 = vperm.xlu0 %111, %v51
    %v113 = vpop.permute.xlu0 %112
    %116 = vset.pattern.permute.xlu0 0
    %117 = vperm.xlu0 %116, %v52
    %v118 = vpop.permute.xlu0 %117
    %121 = vset.pattern.permute.xlu0 0
    %122 = vperm.xlu0 %121, %v53
    %v123 = vpop.permute.xlu0 %122
    %vm125 = vcmask 64512
    %v127 = vsel %vm125, %v46, 0
    %v130 = vsel %vm125, %v47, 0
    %v133 = vsel %vm125, %v48, 0
    %v136 = vsel %vm125, %v49, 0
    %138 = vmatpush.msra.mxu0 0.0
    %139 = vmatpush.msra.mxu0 0.0
    %140 = vmatpush.msra.mxu0 0.0
    %141 = vmatpush.msra.mxu0 0.0
    %142 = vmatpush.msra.mxu0 0.0
    %143 = vmatpush.msra.mxu0 0.0
    %144 = vmatpush.msra.mxu0 0.0
    %145 = vmatpush.msra.mxu0 0.0
    %146 = vmatpush.msra.mxu0 0.0
    %147 = vmatpush.msra.mxu0 0.0
    %148 = vmatpush.msra.mxu0 0.0
    %149 = vmatpush.msra.mxu0 0.0
    %150 = vmatpush.msra.mxu0 0.0
    %151 = vmatpush.msra.mxu0 0.0
    %152 = vmatpush.msra.mxu0 0.0
    %153 = vmatpush.msra.mxu0 %v104
    %154 = vmatmul.f32.gmra.mxu0 %v127
    %v155 = vpop.f32.mrf.mxu0
    %v156 = vadd.f32 %v108, %v155
    %157 = vmatmul.f32.gmra.mxu0 %v130
    %v158 = vpop.f32.mrf.mxu0
    %v159 = vadd.f32 %v113, %v158
    %160 = vmatmul.f32.gmra.mxu0 %v133
    %v161 = vpop.f32.mrf.mxu0
    %v162 = vadd.f32 %v118, %v161
    %163 = vmatmul.f32.gmra.mxu0 %v136
    %v164 = vpop.f32.mrf.mxu0
    %v165 = vadd.f32 %v123, %v164
    %166 = vdwg.mxu0
    %vm167 = vcmask 261120
    %v169 = vsel %vm167, %v54, 0
    %v172 = vsel %vm167, %v55, 0
    %v175 = vsel %vm167, %v56, 0
    %v178 = vsel %vm167, %v57, 0
    %v181 = vsel %vm167, %v58, 0
    %v184 = vsel %vm167, %v59, 0
    %v187 = vsel %vm167, %v60, 0
    %v190 = vsel %vm167, %v61, 0
    %192 = vmatpush.msra.mxu0 0.0
    %193 = vmatpush.msra.mxu0 0.0
    %194 = vmatpush.msra.mxu0 0.0
    %195 = vmatpush.msra.mxu0 0.0
    %196 = vmatpush.msra.mxu0 0.0
    %197 = vmatpush.msra.mxu0 0.0
    %198 = vmatpush.msra.mxu0 0.0
    %199 = vmatpush.msra.mxu0 0.0
    %200 = vmatpush.msra.mxu0 0.0
    %201 = vmatpush.msra.mxu0 0.0
    %202 = vmatpush.msra.mxu0 0.0
    %203 = vmatpush.msra.mxu0 0.0
    %204 = vmatpush.msra.mxu0 %v165
    %205 = vmatpush.msra.mxu0 %v162
    %206 = vmatpush.msra.mxu0 %v159
    %207 = vmatpush.msra.mxu0 %v156
    %208 = vmatmul.f32.gmra.mxu0 %v169
    %v209 = vpop.f32.mrf.mxu0
    %v210 = vadd.f32 %v62, %v209
    %211 = vmatmul.f32.gmra.mxu0 %v172
    %v212 = vpop.f32.mrf.mxu0
    %v213 = vadd.f32 %v63, %v212
    %214 = vmatmul.f32.gmra.mxu0 %v175
    %v215 = vpop.f32.mrf.mxu0
    %v216 = vadd.f32 %v64, %v215
    %217 = vmatmul.f32.gmra.mxu0 %v178
    %v218 = vpop.f32.mrf.mxu0
    %v219 = vadd.f32 %v65, %v218
    %220 = vmatmul.f32.gmra.mxu0 %v181
    %v221 = vpop.f32.mrf.mxu0
    %v222 = vadd.f32 %v66, %v221
    %223 = vmatmul.f32.gmra.mxu0 %v184
    %v224 = vpop.f32.mrf.mxu0
    %v225 = vadd.f32 %v67, %v224
    %226 = vmatmul.f32.gmra.mxu0 %v187
    %v227 = vpop.f32.mrf.mxu0
    %v228 = vadd.f32 %v68, %v227
    %229 = vmatmul.f32.gmra.mxu0 %v190
    %v230 = vpop.f32.mrf.mxu0
    %v231 = vadd.f32 %v69, %v230
    %232 = vdwg.mxu0
    %v234 = vsel %vm167, %v43, 0
    %236 = vmatpush.msra.mxu0 0.0
    %237 = vmatpush.msra.mxu0 0.0
    %238 = vmatpush.msra.mxu0 0.0
    %239 = vmatpush.msra.mxu0 0.0
    %240 = vmatpush.msra.mxu0 0.0
    %241 = vmatpush.msra.mxu0 0.0
    %242 = vmatpush.msra.mxu0 0.0
    %243 = vmatpush.msra.mxu0 0.0
    %244 = vmatpush.msra.mxu0 0.0
    %245 = vmatpush.msra.mxu0 0.0
    %246 = vmatpush.msra.mxu0 0.0
    %247 = vmatpush.msra.mxu0 0.0
    %248 = vmatpush.msra.mxu0 %v219
    %249 = vmatpush.msra.mxu0 %v216
    %250 = vmatpush.msra.mxu0 %v213
    %251 = vmatpush.msra.mxu0 %v210
    %252 = vmatmul.f32.gmra.mxu0 %v234
    %v253 = vpop.f32.mrf.mxu0
    %v254 = vadd.f32 0.0, %v253
    %255 = vdwg.mxu0
    %vm256 = vcmask 138240
    %v257 = vsel %vm256, %v254, -inf
    %258 = vmax.xlane.f32.xlu0 %v257
    %v259 = vpop.xlane.xlu0 %258
    %v260 = vsub.f32 %v254, %v259
    %v261 = vmul.f32 %v260, 1.442695
    %v262 = vpow.pop %v261
    %v263 = vsel %vm256, %v262, 0.0
    %264 = vadd.xlane.f32.xlu0 %v263
    %v265 = vpop.xlane.xlu0 %264
    %v266 = vrcp.pop %v265
    %v267 = vmul.f32 %v262, %v266
    %v269 = vsel %vm256, %v267, 0
    %v272 = vsel %vm256, %v222, 0
    %v275 = vsel %vm256, %v225, 0
    %v278 = vsel %vm256, %v228, 0
    %v281 = vsel %vm256, %v231, 0
    %283 = vmatpush.xpose.msra.mxu0 0.0
    %284 = vmatpush.xpose.msra.mxu0 0.0
    %285 = vmatpush.xpose.msra.mxu0 0.0
    %286 = vmatpush.xpose.msra.mxu0 0.0
    %287 = vmatpush.xpose.msra.mxu0 0.0
    %288 = vmatpush.xpose.msra.mxu0 0.0
    %289 = vmatpush.xpose.msra.mxu0 0.0
    %290 = vmatpush.xpose.msra.mxu0 0.0
    %291 = vmatpush.xpose.msra.mxu0 0.0
    %292 = vmatpush.xpose.msra.mxu0 0.0
    %293 = vmatpush.xpose.msra.mxu0 0.0
    %294 = vmatpush.xpose.msra.mxu0 0.0
    %295 = vmatpush.xpose.msra.mxu0 %v281
    %296 = vmatpush.xpose.msra.mxu0 %v278
    %297 = vmatpush.xpose.msra.mxu0 %v275
    %298 = vmatpush.xpose.msra.mxu0 %v272
    %299 = vmatmul.f32.gmra.mxu0 %v269
    %v300 = vpop.f32.mrf.mxu0
    %v301 = vadd.f32 0.0, %v300
    %302 = vdwg.mxu0
    %s303 = scalar_lea.vmem [#allocation2], 4
    %v304 = vld [vmem:[%s303] sm:$0xf]
    %v306 = vsel %vm80, %v304, 0
    %308 = vmatpush.msra.mxu0 0.0
    %309 = vmatpush.msra.mxu0 0.0
    %310 = vmatpush.msra.mxu0 0.0
    %311 = vmatpush.msra.mxu0 0.0
    %312 = vmatpush.msra.mxu0 0.0
    %313 = vmatpush.msra.mxu0 0.0
    %314 = vmatpush.msra.mxu0 0.0
    %315 = vmatpush.msra.mxu0 0.0
    %316 = vmatpush.msra.mxu0 0.0
    %317 = vmatpush.msra.mxu0 0.0
    %318 = vmatpush.msra.mxu0 0.0
    %319 = vmatpush.msra.mxu0 0.0
    %320 = vmatpush.msra.mxu0 0.0
    %321 = vmatpush.msra.mxu0 0.0
    %322 = vmatpush.msra.mxu0 0.0
    %323 = vmatpush.msra.mxu0 %v306
    %324 = vmatmul.f32.gmra.mxu0 %v78
    %v325 = vpop.f32.mrf.mxu0
    %v326 = vadd.f32 %v74, %v325
    %327 = vdwg.mxu0
    %v328 = vmax.f32 %v326, 0.0
    %329 = vmatpush.msra.mxu0 0.0
    %330 = vmatpush.msra.mxu0 0.0
    %331 = vmatpush.msra.mxu0 0.0
    %332 = vmatpush.msra.mxu0 0.0
    %333 = vmatpush.msra.mxu0 0.0
    %334 = vmatpush.msra.mxu0 0.0
    %335 = vmatpush.msra.mxu0 0.0
    %336 = vmatpush.msra.mxu0 0.0
    %337 = vmatpush.msra.mxu0 0.0
    %338 = vmatpush.msra.mxu0 0.0
    %339 = vmatpush.msra.mxu0 0.0
    %340 = vmatpush.msra.mxu0 0.0
    %341 = vmatpush.msra.mxu0 0.0
    %342 = vmatpush.msra.mxu0 0.0
    %343 = vmatpush.msra.mxu0 0.0
    %344 = vmatpush.msra.mxu0 %v328
    %345 = vmatmul.f32.gmra.mxu0 %v127
    %v346 = vpop.f32.mrf.mxu0
    %v347 = vadd.f32 %v108, %v346
    %348 = vmatmul.f32.gmra.mxu0 %v130
    %v349 = vpop.f32.mrf.mxu0
    %v350 = vadd.f32 %v113, %v349
    %351 = vmatmul.f32.gmra.mxu0 %v133
    %v352 = vpop.f32.mrf.mxu0
    %v353 = vadd.f32 %v118, %v352
    %354 = vmatmul.f32.gmra.mxu0 %v136
    %v355 = vpop.f32.mrf.mxu0
    %v356 = vadd.f32 %v123, %v355
    %357 = vdwg.mxu0
    %358 = vmatpush.msra.mxu0 0.0
    %359 = vmatpush.msra.mxu0 0.0
    %360 = vmatpush.msra.mxu0 0.0
    %361 = vmatpush.msra.mxu0 0.0
    %362 = vmatpush.msra.mxu0 0.0
    %363 = vmatpush.msra.mxu0 0.0
    %364 = vmatpush.msra.mxu0 0.0
    %365 = vmatpush.msra.mxu0 0.0
    %366 = vmatpush.msra.mxu0 0.0
    %367 = vmatpush.msra.mxu0 0.0
    %368 = vmatpush.msra.mxu0 0.0
    %369 = vmatpush.msra.mxu0 0.0
    %370 = vmatpush.msra.mxu0 %v356
    %371 = vmatpush.msra.mxu0 %v353
    %372 = vmatpush.msra.mxu0 %v350
    %373 = vmatpush.msra.mxu0 %v347
    %374 = vmatmul.f32.gmra.mxu0 %v169
    %v375 = vpop.f32.mrf.mxu0
    %v376 = vadd.f32 %v62, %v375
    %377 = vmatmul.f32.gmra.mxu0 %v172
    %v378 = vpop.f32.mrf.mxu0
    %v379 = vadd.f32 %v63, %v378
    %380 = vmatmul.f32.gmra.mxu0 %v175
    %v381 = vpop.f32.mrf.mxu0
    %v382 = vadd.f32 %v64, %v381
    %383 = vmatmul.f32.gmra.mxu0 %v178
    %v384 = vpop.f32.mrf.mxu0
    %v385 = vadd.f32 %v65, %v384
    %386 = vmatmul.f32.gmra.mxu0 %v181
    %v387 = vpop.f32.mrf.mxu0
    %v388 = vadd.f32 %v66, %v387
    %389 = vmatmul.f32.gmra.mxu0 %v184
    %v390 = vpop.f32.mrf.mxu0
    %v391 = vadd.f32 %v67, %v390
    %392 = vmatmul.f32.gmra.mxu0 %v187
    %v393 = vpop.f32.mrf.mxu0
    %v394 = vadd.f32 %v68, %v393
    %395 = vmatmul.f32.gmra.mxu0 %v190
    %v396 = vpop.f32.mrf.mxu0
    %v397 = vadd.f32 %v69, %v396
    %398 = vdwg.mxu0
    %399 = vmatpush.msra.mxu0 0.0
    %400 = vmatpush.msra.mxu0 0.0
    %401 = vmatpush.msra.mxu0 0.0
    %402 = vmatpush.msra.mxu0 0.0
    %403 = vmatpush.msra.mxu0 0.0
    %404 = vmatpush.msra.mxu0 0.0
    %405 = vmatpush.msra.mxu0 0.0
    %406 = vmatpush.msra.mxu0 0.0
    %407 = vmatpush.msra.mxu0 0.0
    %408 = vmatpush.msra.mxu0 0.0
    %409 = vmatpush.msra.mxu0 0.0
    %410 = vmatpush.msra.mxu0 0.0
    %411 = vmatpush.msra.mxu0 %v385
    %412 = vmatpush.msra.mxu0 %v382
    %413 = vmatpush.msra.mxu0 %v379
    %414 = vmatpush.msra.mxu0 %v376
    %415 = vmatmul.f32.gmra.mxu0 %v234
    %v416 = vpop.f32.mrf.mxu0
    %v417 = vadd.f32 0.0, %v416
    %418 = vdwg.mxu0
    %v419 = vsel %vm256, %v417, -inf
    %420 = vmax.xlane.f32.xlu0 %v419
    %v421 = vpop.xlane.xlu0 %420
    %v422 = vsub.f32 %v417, %v421
    %v423 = vmul.f32 %v422, 1.442695
    %v424 = vpow.pop %v423
    %v425 = vsel %vm256, %v424, 0.0
    %426 = vadd.xlane.f32.xlu0 %v425
    %v427 = vpop.xlane.xlu0 %426
    %v428 = vrcp.pop %v427
    %v429 = vmul.f32 %v424, %v428
    %v431 = vsel %vm256, %v429, 0
    %v434 = vsel %vm256, %v388, 0
    %v437 = vsel %vm256, %v391, 0
    %v440 = vsel %vm256, %v394, 0
    %v443 = vsel %vm256, %v397, 0
    %445 = vmatpush.xpose.msra.mxu0 0.0
    %446 = vmatpush.xpose.msra.mxu0 0.0
    %447 = vmatpush.xpose.msra.mxu0 0.0
    %448 = vmatpush.xpose.msra.mxu0 0.0
    %449 = vmatpush.xpose.msra.mxu0 0.0
    %450 = vmatpush.xpose.msra.mxu0 0.0
    %451 = vmatpush.xpose.msra.mxu0 0.0
    %452 = vmatpush.xpose.msra.mxu0 0.0
    %453 = vmatpush.xpose.msra.mxu0 0.0
    %454 = vmatpush.xpose.msra.mxu0 0.0
    %455 = vmatpush.xpose.msra.mxu0 0.0
    %456 = vmatpush.xpose.msra.mxu0 0.0
    %457 = vmatpush.xpose.msra.mxu0 %v443
    %458 = vmatpush.xpose.msra.mxu0 %v440
    %459 = vmatpush.xpose.msra.mxu0 %v437
    %460 = vmatpush.xpose.msra.mxu0 %v434
    %461 = vmatmul.f32.gmra.mxu0 %v431
    %v462 = vpop.f32.mrf.mxu0
    %v463 = vadd.f32 0.0, %v462
    %464 = vdwg.mxu0
    %v465 = vld [vmem:[#allocation4 + $0xd8] sm:$0xff]
    %v466 = vld [vmem:[#allocation4 + $0xe0] sm:$0xff]
    %v467 = vld [vmem:[#allocation4 + $0xe8] sm:$0xff]
    %v468 = vld [vmem:[#allocation4 + $0xf0] sm:$0xff]
    %v469 = vld [vmem:[#allocation4 + $0xf8] sm:$0x1]
    %v470 = vld [vmem:[#allocation4 + $0x100] sm:$0xff]
    %v471 = vld [vmem:[#allocation4 + $0x108] sm:$0xff]
    %v472 = vld [vmem:[#allocation4 + $0x110] sm:$0xff]
    %v473 = vld [vmem:[#allocation4 + $0x118] sm:$0xff]
    %v474 = vld [vmem:[#allocation4 + $0x120] sm:$0x1]
    %v475 = vld [vmem:[#allocation4 + $0x128] sm:$0xff]
    %v476 = vld [vmem:[#allocation4 + $0x130] sm:$0xff]
    %v477 = vld [vmem:[#allocation4 + $0x138] sm:$0xff]
    %v478 = vld [vmem:[#allocation4 + $0x140] sm:$0xff]
    %v479 = vld [vmem:[#allocation4 + $0x148] sm:$0x1]
    %v480 = vld [vmem:[#allocation4 + $0x150] sm:$0xff]
    %v481 = vld [vmem:[#allocation4 + $0x158] sm:$0xff]
    %v482 = vld [vmem:[#allocation4 + $0x160] sm:$0xff]
    %v483 = vld [vmem:[#allocation4 + $0x168] sm:$0xff]
    %v484 = vld [vmem:[#allocation4 + $0x170] sm:$0xff]
    %v485 = vld [vmem:[#allocation4 + $0x178] sm:$0xff]
    %v486 = vld [vmem:[#allocation4 + $0x180] sm:$0xff]
    %v487 = vld [vmem:[#allocation4 + $0x188] sm:$0xff]
    %v488 = vld [vmem:[#allocation4 + $0x190] sm:$0x1]
    %v489 = vperm.slane %v469, 0
    %v491 = vsel %vm167, %v301, 0
    %v494 = vsel %vm167, %v463, 0
    %496 = vmatpush.msra.mxu0 0.0
    %497 = vmatpush.msra.mxu0 0.0
    %498 = vmatpush.msra.mxu0 0.0
    %499 = vmatpush.msra.mxu0 0.0
    %500 = vmatpush.msra.mxu0 0.0
    %501 = vmatpush.msra.mxu0 0.0
    %502 = vmatpush.msra.mxu0 0.0
    %503 = vmatpush.msra.mxu0 0.0
    %504 = vmatpush.msra.mxu0 0.0
    %505 = vmatpush.msra.mxu0 0.0
    %506 = vmatpush.msra.mxu0 0.0
    %507 = vmatpush.msra.mxu0 0.0
    %508 = vmatpush.msra.mxu0 %v468
    %509 = vmatpush.msra.mxu0 %v467
    %510 = vmatpush.msra.mxu0 %v466
    %511 = vmatpush.msra.mxu0 %v465
    %512 = vmatmul.f32.gmra.mxu0 %v491
    %v513 = vpop.f32.mrf.mxu0
    %v514 = vadd.f32 %v489, %v513
    %515 = vmatmul.f32.gmra.mxu0 %v494
    %v516 = vpop.f32.mrf.mxu0
    %v517 = vadd.f32 %v489, %v516
    %518 = vdwg.mxu0
    %v519 = vperm.slane %v474, 0
    %v521 = vsel %vm167, %v514, 0
    %v524 = vsel %vm167, %v517, 0
    %526 = vmatpush.msra.mxu0 0.0
    %527 = vmatpush.msra.mxu0 0.0
    %528 = vmatpush.msra.mxu0 0.0
    %529 = vmatpush.msra.mxu0 0.0
    %530 = vmatpush.msra.mxu0 0.0
    %531 = vmatpush.msra.mxu0 0.0
    %532 = vmatpush.msra.mxu0 0.0
    %533 = vmatpush.msra.mxu0 0.0
    %534 = vmatpush.msra.mxu0 0.0
    %535 = vmatpush.msra.mxu0 0.0
    %536 = vmatpush.msra.mxu0 0.0
    %537 = vmatpush.msra.mxu0 0.0
    %538 = vmatpush.msra.mxu0 %v473
    %539 = vmatpush.msra.mxu0 %v472
    %540 = vmatpush.msra.mxu0 %v471
    %541 = vmatpush.msra.mxu0 %v470
    %542 = vmatmul.f32.gmra.mxu0 %v521
    %v543 = vpop.f32.mrf.mxu0
    %v544 = vadd.f32 %v519, %v543
    %545 = vmatmul.f32.gmra.mxu0 %v524
    %v546 = vpop.f32.mrf.mxu0
    %v547 = vadd.f32 %v519, %v546
    %548 = vdwg.mxu0
    %v549 = vmax.f32 %v544, 0.0
    %v550 = vmax.f32 %v547, 0.0
    %v551 = vperm.slane %v479, 0
    %v553 = vsel %vm167, %v549, 0
    %v556 = vsel %vm167, %v550, 0
    %558 = vmatpush.msra.mxu0 0.0
    %559 = vmatpush.msra.mxu0 0.0
    %560 = vmatpush.msra.mxu0 0.0
    %561 = vmatpush.msra.mxu0 0.0
    %562 = vmatpush.msra.mxu0 0.0
    %563 = vmatpush.msra.mxu0 0.0
    %564 = vmatpush.msra.mxu0 0.0
    %565 = vmatpush.msra.mxu0 0.0
    %566 = vmatpush.msra.mxu0 0.0
    %567 = vmatpush.msra.mxu0 0.0
    %568 = vmatpush.msra.mxu0 0.0
    %569 = vmatpush.msra.mxu0 0.0
    %570 = vmatpush.msra.mxu0 %v478
    %571 = vmatpush.msra.mxu0 %v477
    %572 = vmatpush.msra.mxu0 %v476
    %573 = vmatpush.msra.mxu0 %v475
    %574 = vmatmul.f32.gmra.mxu0 %v553
    %v575 = vpop.f32.mrf.mxu0
    %v576 = vadd.f32 %v551, %v575
    %577 = vmatmul.f32.gmra.mxu0 %v556
    %v578 = vpop.f32.mrf.mxu0
    %v579 = vadd.f32 %v551, %v578
    %580 = vdwg.mxu0
    %v581 = vmax.f32 %v576, 0.0
    %v582 = vmax.f32 %v579, 0.0
    %v584 = vsel %vm167, %v581, 0
    %v587 = vsel %vm167, %v582, 0
    %589 = vmatpush.msra.mxu0 0.0
    %590 = vmatpush.msra.mxu0 0.0
    %591 = vmatpush.msra.mxu0 0.0
    %592 = vmatpush.msra.mxu0 0.0
    %593 = vmatpush.msra.mxu0 0.0
    %594 = vmatpush.msra.mxu0 0.0
    %595 = vmatpush.msra.mxu0 0.0
    %596 = vmatpush.msra.mxu0 0.0
    %597 = vmatpush.msra.mxu0 0.0
    %598 = vmatpush.msra.mxu0 0.0
    %599 = vmatpush.msra.mxu0 0.0
    %600 = vmatpush.msra.mxu0 0.0
    %601 = vmatpush.msra.mxu0 %v487
    %602 = vmatpush.msra.mxu0 %v486
    %603 = vmatpush.msra.mxu0 %v485
    %604 = vmatpush.msra.mxu0 %v484
    %605 = vmatmul.f32.gmra.mxu0 %v584
    %v606 = vpop.f32.mrf.mxu0
    %v607 = vadd.f32 0.0, %v606
    %608 = vmatmul.f32.gmra.mxu0 %v587
    %v609 = vpop.f32.mrf.mxu0
    %v610 = vadd.f32 0.0, %v609
    %611 = vdwg.mxu0
    %612 = vmatpush.msra.mxu0 0.0
    %613 = vmatpush.msra.mxu0 0.0
    %614 = vmatpush.msra.mxu0 0.0
    %615 = vmatpush.msra.mxu0 0.0
    %616 = vmatpush.msra.mxu0 0.0
    %617 = vmatpush.msra.mxu0 0.0
    %618 = vmatpush.msra.mxu0 0.0
    %619 = vmatpush.msra.mxu0 0.0
    %620 = vmatpush.msra.mxu0 0.0
    %621 = vmatpush.msra.mxu0 0.0
    %622 = vmatpush.msra.mxu0 0.0
    %623 = vmatpush.msra.mxu0 0.0
    %624 = vmatpush.msra.mxu0 %v483
    %625 = vmatpush.msra.mxu0 %v482
    %626 = vmatpush.msra.mxu0 %v481
    %627 = vmatpush.msra.mxu0 %v480
    %628 = vmatmul.f32.gmra.mxu0 %v521
    %v629 = vpop.f32.mrf.mxu0
    %v630 = vadd.f32 %v607, %v629
    %631 = vmatmul.f32.gmra.mxu0 %v524
    %v632 = vpop.f32.mrf.mxu0
    %v633 = vadd.f32 %v610, %v632
    %634 = vdwg.mxu0
    %v635 = vperm.slane %v488, 0
    %v636 = vadd.f32 %v630, %v635
    %v637 = vadd.f32 %v633, %v635
    %v638 = vlaneseq
    %v639 = vand.u32 %v638, 127
    %vm640 = vcmp.ge.s32.totalorder %v639, 5
    %vm641 = vcmp.lt.s32.totalorder %v639, 7
    %vm642 = vmand %vm640, %vm641
    %v643 = vxor.u32 %v636, 2147483648
    %v644 = vxor.u32 %v637, 2147483648
    %v645 = vmul.f32 %v643, 1.442695
    %v646 = vpow.pop %v645
    %v647 = vmul.f32 %v644, 1.442695
    %v648 = vpow.pop %v647
    %v649 = vadd.f32 %v646, 1.0
    %v650 = vadd.f32 %v648, 1.0
    %v651 = vrcp.pop %v649
    %v652 = vmul.f32 %v649, %v651
    %v653 = vsub.f32 1.0, %v652
    %v654 = vmul.f32 %v651, %v653
    %v655 = vadd.f32 %v651, %v654
    %vm656 = vweird.f32 %v649
    %vm657 = vweird.f32 %v651
    %vm658 = vmor %vm656, %vm657
    %v659 = vsel %vm658, %v651, %v655
    %v660 = vand.u32 2147483647, %v649
    %vm661 = vcmp.eq.f32.partialorder %v660, 8.507059e+37
    %v662 = vand.u32 %v649, 2147483648
    %v663 = vor.u32 1.1754944e-38, %v662
    %v664 = vsel %vm661, %v663, %v659
    %v665 = vmul.f32 1.0, %v664
    %v666 = vrcp.pop %v650
    %v667 = vmul.f32 %v650, %v666
    %v668 = vsub.f32 1.0, %v667
    %v669 = vmul.f32 %v666, %v668
    %v670 = vadd.f32 %v666, %v669
    %vm671 = vweird.f32 %v650
    %vm672 = vweird.f32 %v666
    %vm673 = vmor %vm671, %vm672
    %v674 = vsel %vm673, %v666, %v670
    %v675 = vand.u32 2147483647, %v650
    %vm676 = vcmp.eq.f32.partialorder %v675, 8.507059e+37
    %v677 = vand.u32 %v650, 2147483648
    %v678 = vor.u32 1.1754944e-38, %v677
    %v679 = vsel %vm676, %v678, %v674
    %v680 = vmul.f32 1.0, %v679
    %v681 = vsel %vm642, %v665, %v636
    %v682 = vsel %vm642, %v680, %v637
    %683 = vst [vmem:[%s2] sm:$0xff] %v681
    %684 = vst [vmem:[%s2 + $0x8] sm:$0xff] %v682
    // Predicated region
    $region18: #{ecg_detr_forward.1} parent=1 // pred_check
      _
    $region19: #{ecg_detr_forward.1} parent=1 // pred_check_branch
      %686 = sbr.rel (0) target = $region21
    $region20: #{ecg_detr_forward.1} parent=1 // pred_region
      _
    $region21: #{ecg_detr_forward.1} parent=1 // pred_fallthru
      _
    // Predicated region
    $region22: #{ecg_detr_forward.1} parent=1 // pred_check
      _
    $region23: #{ecg_detr_forward.1} parent=1 // pred_check_branch
      %688 = sbr.rel (0) target = $region25
    $region24: #{ecg_detr_forward.1} parent=1 // pred_region
      _
    $region25: #{ecg_detr_forward.1} parent=1 // pred_fallthru
      _
    %689 = vsyncpa [#allocation3], 1
    %690 = vsyncpa [#allocation5], 1

</llo_original>
